<compile_context>
chip_gen: v5e
topology: v5e:2x2
jax: 0.10.0
libtpu: 0.0.40
codegen_flags: <defaults>
</compile_context>

<pallas_src>
from functools import partial

import jax
import jax.numpy as jnp
from jax.experimental import pallas as pl
from jax.experimental.pallas import tpu as pltpu

HIDDEN_UNITS = 32
NUM_CLASSES = 10          # FashionMNIST classes
INPUT_DIM = 16
NUM_NODES = 32
NUM_GRAPHS = 2
NUM_EDGES = 64
BATCH_INSTANCES = 4       # graph instances processed per kernel call
NUM_BLOCKS = 1            # grid steps; 1 for v5e/v6e (single TC), 2 for v7x (2 TCs)

LANES = 128               # lane-padded feature width for every layer


def gnn_kernel(x_ref, a_ref, p_ref, inv_ref, w_ref, b_ref, out_ref):
    """One stacked block of instances per grid step.

    x_ref  : [1, BN, 128]   bf16  stacked node features, lane-padded
    a_ref  : [1, BN, BN]    bf16  block-diagonal dense adjacency (dst, src)
    p_ref  : [1, GP, BN]    bf16  0/1 pooling membership (exact in bf16)
    inv_ref: [1, GP, 128]   f32   1 / node-count per pooled graph row
    w_ref  : [6*128, 128]   bf16  packed weight slab:
                                   rows [0,128)=W1_root  [128,256)=W1_nbr
                                   rows [256,384)=W2_root [384,512)=W2_nbr
                                   rows [512,640)=Wfc1   [640,768)=Wfc2
    b_ref  : [8, 128]       f32   packed biases: rows 0..3 = b1,b2,bfc1,bfc2
    out_ref: [1, GP, 128]   f32   logits (real data in [:B*G, :C])
    """
    f32, bf16 = jnp.float32, jnp.bfloat16
    L = LANES
    x = x_ref[0]                       # [BN, 128]
    a = a_ref[0]                       # [BN, BN]
    p = p_ref[0]                       # [GP, BN]
    inv = inv_ref[0]                   # [GP, 128]
    b = b_ref[...]                     # [8, 128]

    def graph_conv(h, w_off, bias_row):
        # root + neighbor dots, both f32-accumulated on the MXU
        agg = jnp.dot(a, h, preferred_element_type=f32).astype(bf16)
        y = (jnp.dot(h, w_ref[w_off:w_off + L, :], preferred_element_type=f32)
             + jnp.dot(agg, w_ref[w_off + L:w_off + 2 * L, :],
                       preferred_element_type=f32)
             + b[bias_row:bias_row + 1, :])
        return jnp.maximum(y, 0.0).astype(bf16)

    h1 = graph_conv(x, 0, 0)                                             # [BN, 128]
    h2 = graph_conv(h1, 2 * L, 1)                                        # [BN, 128]

    # global_mean_pool: exact 0/1 matmul (f32 accumulate) + f32 count divide
    g = (jnp.dot(p, h2, preferred_element_type=f32) * inv).astype(bf16)  # [GP, 128]

    # fc1 + ReLU
    f1 = jnp.maximum(jnp.dot(g, w_ref[4 * L:5 * L, :],
                             preferred_element_type=f32) + b[2:3, :], 0.0)
    f1 = f1.astype(bf16)                                                 # [GP, 128]

    # fc2
    out_ref[0] = (jnp.dot(f1, w_ref[5 * L:6 * L, :],
                          preferred_element_type=f32) + b[3:4, :])


@partial(jax.jit, static_argnames=("num_graphs", "num_blocks"))
def gnn_forward(x, edge_index, batch, params, *, num_graphs, num_blocks=NUM_BLOCKS):
    """x: [B, N, D_in] f32, edge_index: [B, 2, E] i32, batch: [B, N] i32."""
    bsz, n, d_in = x.shape
    hidden = params["wfc1"].shape[0]
    out_dim = params["wfc2"].shape[1]
    assert d_in <= LANES and hidden <= LANES and out_dim <= LANES
    assert bsz % num_blocks == 0
    ipb = bsz // num_blocks           # instances stacked per block
    bn = ipb * n                      # stacked node rows per block
    gr = ipb * num_graphs             # real pooled-graph rows per block
    grp = max(8, -(-gr // 8) * 8)     # sublane-padded pooled rows

    # ---- graph-structure matrices via one-hot matmuls (no XLA scatter) ----
    src, dst = edge_index[:, 0, :], edge_index[:, 1, :]                    # [B, E]
    dst_oh = jax.nn.one_hot(dst, n, dtype=jnp.float32)                     # [B, E, N]
    src_oh = jax.nn.one_hot(src, n, dtype=jnp.float32)                     # [B, E, N]
    adj = jnp.einsum("bei,bej->bij", dst_oh, src_oh)                       # [B, N, N]

    pool_oh = (batch[:, None, :] ==
               jnp.arange(num_graphs)[None, :, None]).astype(jnp.float32)  # [B, G, N]
    cnt = pool_oh.sum(axis=-1)                                             # [B, G]

    # ---- block-diagonal stacking within each grid block ----
    eye = jnp.eye(ipb, dtype=jnp.float32)
    adj_c = adj.reshape(num_blocks, ipb, n, n)
    adj_bd = jnp.einsum("cbij,bd->cbidj", adj_c, eye).reshape(num_blocks, bn, bn)

    pool_c = pool_oh.reshape(num_blocks, ipb, num_graphs, n)
    pool_bd = jnp.einsum("cbgn,bd->cbgdn", pool_c, eye).reshape(num_blocks, gr, bn)
    pool_bd = jnp.pad(pool_bd, ((0, 0), (0, grp - gr), (0, 0)))            # [nb, grp, bn]

    inv_cnt = 1.0 / jnp.maximum(cnt.reshape(num_blocks, gr), 1.0)
    inv_cnt = jnp.pad(inv_cnt, ((0, 0), (0, grp - gr)), constant_values=1.0)
    inv_cnt = jnp.broadcast_to(inv_cnt[..., None],
                               (num_blocks, grp, LANES)).astype(jnp.float32)

    # ---- pack weights into one lane-dense bf16 slab, biases into one f32 slab ----
    def lane_pad(w):
        return jnp.pad(w, ((0, 0), (0, LANES - w.shape[1])))

    def blk(w):                                 # [K, out] -> [128, 128] zero-padded
        w = lane_pad(w)
        return jnp.pad(w, ((0, LANES - w.shape[0]), (0, 0)))

    w_slab = jnp.concatenate([
        blk(params["w1_root"]), blk(params["w1_nbr"]),
        blk(params["w2_root"]), blk(params["w2_nbr"]),
        blk(params["wfc1"]), blk(params["wfc2"]),
    ], axis=0).astype(jnp.bfloat16)                                        # [768, 128]

    b_slab = jnp.concatenate([
        lane_pad(params["b1"]), lane_pad(params["b2"]),
        lane_pad(params["bfc1"]), lane_pad(params["bfc2"]),
        jnp.zeros((4, LANES), jnp.float32),
    ], axis=0)                                                             # [8, 128]

    # ---- bf16 MXU operands, node features stacked + lane-padded ----
    x_p = jnp.pad(x, ((0, 0), (0, 0), (0, LANES - d_in)))
    x_p = x_p.reshape(num_blocks, bn, LANES).astype(jnp.bfloat16)
    adj_b = adj_bd.astype(jnp.bfloat16)       # small-integer multiplicities: bf16-exact
    pool_b = pool_bd.astype(jnp.bfloat16)     # 0/1: bf16-exact

    out = pl.pallas_call(
        gnn_kernel,
        out_shape=jax.ShapeDtypeStruct((num_blocks, grp, LANES), jnp.float32),
        grid=(num_blocks,),
        in_specs=[
            pl.BlockSpec((1, bn, LANES), lambda c: (c, 0, 0)),
            pl.BlockSpec((1, bn, bn), lambda c: (c, 0, 0)),
            pl.BlockSpec((1, grp, bn), lambda c: (c, 0, 0)),
            pl.BlockSpec((1, grp, LANES), lambda c: (c, 0, 0)),
            pl.BlockSpec((6 * LANES, LANES), lambda c: (0, 0)),   # grid-invariant weights
            pl.BlockSpec((8, LANES), lambda c: (0, 0)),           # grid-invariant biases
        ],
        out_specs=pl.BlockSpec((1, grp, LANES), lambda c: (c, 0, 0)),
        compiler_params=pltpu.CompilerParams(
            dimension_semantics=("parallel",)),
    )(x_p, adj_b, pool_b, inv_cnt, w_slab, b_slab)

    out = out[:, :gr, :].reshape(bsz, num_graphs, LANES)
    return out[:, :, :out_dim]


def gnn_reference(x, edge_index, batch, params, num_graphs):
    """Pure-JAX f32 reference matching PyG GraphConv / global_mean_pool / Linear."""
    def single(xi, ei, bi):
        src, dst = ei[0], ei[1]

        def graph_conv(h, wr, wn, b):
            agg = jnp.zeros_like(h).at[dst].add(h[src])
            return h @ wr + agg @ wn + b

        h = jax.nn.relu(graph_conv(xi, params["w1_root"], params["w1_nbr"], params["b1"]))
        h = jax.nn.relu(graph_conv(h, params["w2_root"], params["w2_nbr"], params["b2"]))
        sums = jnp.zeros((num_graphs, h.shape[1]), h.dtype).at[bi].add(h)
        cnts = jnp.maximum(jnp.zeros((num_graphs, 1), h.dtype).at[bi].add(1.0), 1.0)
        g = sums / cnts
        f1 = jax.nn.relu(g @ params["wfc1"] + params["bfc1"])
        return f1 @ params["wfc2"] + params["bfc2"]

    return jax.vmap(single)(x, edge_index, batch)


def init_params(key, input_dim, hidden_dim, output_dim):
    ks = jax.random.split(key, 10)
    s = lambda fan_in: 1.0 / jnp.sqrt(fan_in)
    return {
        # GraphConv1 (weights stored as [in, out]; bias broadcast row)
        "w1_root": jax.random.uniform(ks[0], (input_dim, hidden_dim), jnp.float32,
                                      -s(input_dim), s(input_dim)),
        "w1_nbr":  jax.random.uniform(ks[1], (input_dim, hidden_dim), jnp.float32,
                                      -s(input_dim), s(input_dim)),
        "b1":      jax.random.uniform(ks[2], (1, hidden_dim), jnp.float32,
                                      -s(input_dim), s(input_dim)),
        # GraphConv2
        "w2_root": jax.random.uniform(ks[3], (hidden_dim, hidden_dim), jnp.float32,
                                      -s(hidden_dim), s(hidden_dim)),
        "w2_nbr":  jax.random.uniform(ks[4], (hidden_dim, hidden_dim), jnp.float32,
                                      -s(hidden_dim), s(hidden_dim)),
        "b2":      jax.random.uniform(ks[5], (1, hidden_dim), jnp.float32,
                                      -s(hidden_dim), s(hidden_dim)),
        # fc1 / fc2 (stored pre-transposed: [in, out])
        "wfc1":    jax.random.uniform(ks[6], (hidden_dim, hidden_dim), jnp.float32,
                                      -s(hidden_dim), s(hidden_dim)),
        "bfc1":    jax.random.uniform(ks[7], (1, hidden_dim), jnp.float32,
                                      -s(hidden_dim), s(hidden_dim)),
        "wfc2":    jax.random.uniform(ks[8], (hidden_dim, output_dim), jnp.float32,
                                      -s(hidden_dim), s(hidden_dim)),
        "bfc2":    jax.random.uniform(ks[9], (1, output_dim), jnp.float32,
                                      -s(hidden_dim), s(hidden_dim)),
    }


if __name__ == "__main__":
    key = jax.random.PRNGKey(0)
    k_x, k_e, k_p = jax.random.split(key, 3)

    B = BATCH_INSTANCES
    # Node features [B, N, D_in]
    x = jax.random.normal(k_x, (B, NUM_NODES, INPUT_DIM), jnp.float32)

    # Random directed edges per instance; original module's guard preserved
    edge_index = jax.random.randint(k_e, (B, 2, NUM_EDGES), 0, NUM_NODES, jnp.int32)
    assert int(edge_index.max()) < NUM_NODES

    # Batch assignment per instance: first half -> graph 0, second half -> graph 1
    batch = jnp.tile(jnp.concatenate([
        jnp.zeros((NUM_NODES // 2,), jnp.int32),
        jnp.ones((NUM_NODES - NUM_NODES // 2,), jnp.int32),
    ])[None, :], (B, 1))

    params = init_params(k_p, INPUT_DIM, HIDDEN_UNITS, NUM_CLASSES)

    out = gnn_forward(x, edge_index, batch, params, num_graphs=NUM_GRAPHS)
    out = jax.block_until_ready(out)

    ref = gnn_reference(x, edge_index, batch, params, NUM_GRAPHS)
    assert out.shape == (B, NUM_GRAPHS, NUM_CLASSES)
    # bf16 MXU operands with f32 accumulation and f32 mean-divide -> tightened
    # tolerance vs the previous version's 1e-1.
    assert jnp.allclose(out, ref, atol=6e-2, rtol=6e-2), "Pallas output != JAX reference"

    print("KERNEL_OK")
</pallas_src>

<mosaic_0001>
module attributes {stable_mosaic.version = 11 : i64} {
  func.func @gnn_kernel(%arg0: i32, %arg1: memref<1x128x128xbf16, #tpu.memory_space<vmem>>, %arg2: memref<1x128x128xbf16, #tpu.memory_space<vmem>>, %arg3: memref<1x8x128xbf16, #tpu.memory_space<vmem>>, %arg4: memref<1x8x128xf32, #tpu.memory_space<vmem>>, %arg5: memref<768x128xbf16, #tpu.memory_space<vmem>>, %arg6: memref<8x128xf32, #tpu.memory_space<vmem>>, %arg7: memref<1x8x128xf32, #tpu.memory_space<vmem>>) attributes {dimension_semantics = [#tpu.dimension_semantics<parallel>], iteration_bounds = array<i64: 1>, scalar_prefetch = 0 : i64, scratch_operands = 0 : i64, tpu.core_type = #tpu.core_type<tc>, window_params = [{transform_indices = @transform_0, window_bounds = array<i64: 1, 128, 128>}, {transform_indices = @transform_1, window_bounds = array<i64: 1, 128, 128>}, {transform_indices = @transform_2, window_bounds = array<i64: 1, 8, 128>}, {transform_indices = @transform_3, window_bounds = array<i64: 1, 8, 128>}, {pipeline_mode = #tpu.pipeline_mode<synchronous>, transform_indices = @transform_4, window_bounds = array<i64: 768, 128>}, {pipeline_mode = #tpu.pipeline_mode<synchronous>, transform_indices = @transform_5, window_bounds = array<i64: 8, 128>}, {transform_indices = @transform_6, window_bounds = array<i64: 1, 8, 128>}]} {
    %c0 = arith.constant 0 : index
    %c0_0 = arith.constant 0 : index
    %c0_1 = arith.constant 0 : index
    %0 = vector.load %arg1[%c0, %c0_0, %c0_1] : memref<1x128x128xbf16, #tpu.memory_space<vmem>>, vector<1x128x128xbf16>
    %1 = vector.shape_cast %0 : vector<1x128x128xbf16> to vector<128x128xbf16>
    %c0_2 = arith.constant 0 : index
    %c0_3 = arith.constant 0 : index
    %c0_4 = arith.constant 0 : index
    %2 = vector.load %arg2[%c0_2, %c0_3, %c0_4] : memref<1x128x128xbf16, #tpu.memory_space<vmem>>, vector<1x128x128xbf16>
    %3 = vector.shape_cast %2 : vector<1x128x128xbf16> to vector<128x128xbf16>
    %c0_5 = arith.constant 0 : index
    %c0_6 = arith.constant 0 : index
    %c0_7 = arith.constant 0 : index
    %4 = vector.load %arg3[%c0_5, %c0_6, %c0_7] : memref<1x8x128xbf16, #tpu.memory_space<vmem>>, vector<1x8x128xbf16>
    %5 = vector.shape_cast %4 : vector<1x8x128xbf16> to vector<8x128xbf16>
    %c0_8 = arith.constant 0 : index
    %c0_9 = arith.constant 0 : index
    %c0_10 = arith.constant 0 : index
    %6 = vector.load %arg4[%c0_8, %c0_9, %c0_10] : memref<1x8x128xf32, #tpu.memory_space<vmem>>, vector<1x8x128xf32>
    %7 = vector.shape_cast %6 : vector<1x8x128xf32> to vector<8x128xf32>
    %c0_11 = arith.constant 0 : index
    %c0_12 = arith.constant 0 : index
    %8 = vector.load %arg6[%c0_11, %c0_12] : memref<8x128xf32, #tpu.memory_space<vmem>>, vector<8x128xf32>
    %cst = arith.constant dense<0.000000e+00> : vector<128x128xf32>
    %9 = tpu.matmul %3, %1, %cst {dimension_numbers = #tpu.dot_dimension_numbers<[1], [0], [0], [1], [0, 0, 1, 1], [], []>} : vector<128x128xbf16>, vector<128x128xbf16>, vector<128x128xf32> -> vector<128x128xf32>
    %10 = arith.truncf %9 : vector<128x128xf32> to vector<128x128xbf16>
    %c0_13 = arith.constant 0 : index
    %c0_14 = arith.constant 0 : index
    %11 = vector.load %arg5[%c0_13, %c0_14] : memref<768x128xbf16, #tpu.memory_space<vmem>>, vector<128x128xbf16>
    %cst_15 = arith.constant dense<0.000000e+00> : vector<128x128xf32>
    %12 = tpu.matmul %1, %11, %cst_15 {dimension_numbers = #tpu.dot_dimension_numbers<[1], [0], [0], [1], [0, 0, 1, 1], [], []>} : vector<128x128xbf16>, vector<128x128xbf16>, vector<128x128xf32> -> vector<128x128xf32>
    %c128 = arith.constant 128 : index
    %c0_16 = arith.constant 0 : index
    %13 = vector.load %arg5[%c128, %c0_16] : memref<768x128xbf16, #tpu.memory_space<vmem>>, vector<128x128xbf16>
    %cst_17 = arith.constant dense<0.000000e+00> : vector<128x128xf32>
    %14 = tpu.matmul %10, %13, %cst_17 {dimension_numbers = #tpu.dot_dimension_numbers<[1], [0], [0], [1], [0, 0, 1, 1], [], []>} : vector<128x128xbf16>, vector<128x128xbf16>, vector<128x128xf32> -> vector<128x128xf32>
    %15 = arith.addf %12, %14 : vector<128x128xf32>
    %16 = vector.extract_strided_slice %8 {offsets = [0, 0], sizes = [1, 128], strides = [1, 1]} : vector<8x128xf32> to vector<1x128xf32>
    %17 = vector.broadcast %16 : vector<1x128xf32> to vector<128x128xf32>
    %18 = arith.addf %15, %17 : vector<128x128xf32>
    %cst_18 = arith.constant 0.000000e+00 : f32
    %19 = vector.broadcast %cst_18 : f32 to vector<128x128xf32>
    %20 = arith.maximumf %18, %19 : vector<128x128xf32>
    %21 = arith.truncf %20 : vector<128x128xf32> to vector<128x128xbf16>
    %cst_19 = arith.constant dense<0.000000e+00> : vector<128x128xf32>
    %22 = tpu.matmul %3, %21, %cst_19 {dimension_numbers = #tpu.dot_dimension_numbers<[1], [0], [0], [1], [0, 0, 1, 1], [], []>} : vector<128x128xbf16>, vector<128x128xbf16>, vector<128x128xf32> -> vector<128x128xf32>
    %23 = arith.truncf %22 : vector<128x128xf32> to vector<128x128xbf16>
    %c256 = arith.constant 256 : index
    %c0_20 = arith.constant 0 : index
    %24 = vector.load %arg5[%c256, %c0_20] : memref<768x128xbf16, #tpu.memory_space<vmem>>, vector<128x128xbf16>
    %cst_21 = arith.constant dense<0.000000e+00> : vector<128x128xf32>
    %25 = tpu.matmul %21, %24, %cst_21 {dimension_numbers = #tpu.dot_dimension_numbers<[1], [0], [0], [1], [0, 0, 1, 1], [], []>} : vector<128x128xbf16>, vector<128x128xbf16>, vector<128x128xf32> -> vector<128x128xf32>
    %c384 = arith.constant 384 : index
    %c0_22 = arith.constant 0 : index
    %26 = vector.load %arg5[%c384, %c0_22] : memref<768x128xbf16, #tpu.memory_space<vmem>>, vector<128x128xbf16>
    %cst_23 = arith.constant dense<0.000000e+00> : vector<128x128xf32>
    %27 = tpu.matmul %23, %26, %cst_23 {dimension_numbers = #tpu.dot_dimension_numbers<[1], [0], [0], [1], [0, 0, 1, 1], [], []>} : vector<128x128xbf16>, vector<128x128xbf16>, vector<128x128xf32> -> vector<128x128xf32>
    %28 = arith.addf %25, %27 : vector<128x128xf32>
    %29 = vector.extract_strided_slice %8 {offsets = [1, 0], sizes = [1, 128], strides = [1, 1]} : vector<8x128xf32> to vector<1x128xf32>
    %30 = vector.broadcast %29 : vector<1x128xf32> to vector<128x128xf32>
    %31 = arith.addf %28, %30 : vector<128x128xf32>
    %cst_24 = arith.constant 0.000000e+00 : f32
    %32 = vector.broadcast %cst_24 : f32 to vector<128x128xf32>
    %33 = arith.maximumf %31, %32 : vector<128x128xf32>
    %34 = arith.truncf %33 : vector<128x128xf32> to vector<128x128xbf16>
    %cst_25 = arith.constant dense<0.000000e+00> : vector<8x128xf32>
    %35 = tpu.matmul %5, %34, %cst_25 {dimension_numbers = #tpu.dot_dimension_numbers<[1], [0], [0], [1], [0, 0, 1, 1], [], []>} : vector<8x128xbf16>, vector<128x128xbf16>, vector<8x128xf32> -> vector<8x128xf32>
    %36 = arith.mulf %35, %7 : vector<8x128xf32>
    %37 = arith.truncf %36 : vector<8x128xf32> to vector<8x128xbf16>
    %c512 = arith.constant 512 : index
    %c0_26 = arith.constant 0 : index
    %38 = vector.load %arg5[%c512, %c0_26] : memref<768x128xbf16, #tpu.memory_space<vmem>>, vector<128x128xbf16>
    %cst_27 = arith.constant dense<0.000000e+00> : vector<8x128xf32>
    %39 = tpu.matmul %37, %38, %cst_27 {dimension_numbers = #tpu.dot_dimension_numbers<[1], [0], [0], [1], [0, 0, 1, 1], [], []>} : vector<8x128xbf16>, vector<128x128xbf16>, vector<8x128xf32> -> vector<8x128xf32>
    %40 = vector.extract_strided_slice %8 {offsets = [2, 0], sizes = [1, 128], strides = [1, 1]} : vector<8x128xf32> to vector<1x128xf32>
    %41 = vector.broadcast %40 : vector<1x128xf32> to vector<8x128xf32>
    %42 = arith.addf %39, %41 : vector<8x128xf32>
    %cst_28 = arith.constant 0.000000e+00 : f32
    %43 = vector.broadcast %cst_28 : f32 to vector<8x128xf32>
    %44 = arith.maximumf %42, %43 : vector<8x128xf32>
    %45 = arith.truncf %44 : vector<8x128xf32> to vector<8x128xbf16>
    %c640 = arith.constant 640 : index
    %c0_29 = arith.constant 0 : index
    %46 = vector.load %arg5[%c640, %c0_29] : memref<768x128xbf16, #tpu.memory_space<vmem>>, vector<128x128xbf16>
    %cst_30 = arith.constant dense<0.000000e+00> : vector<8x128xf32>
    %47 = tpu.matmul %45, %46, %cst_30 {dimension_numbers = #tpu.dot_dimension_numbers<[1], [0], [0], [1], [0, 0, 1, 1], [], []>} : vector<8x128xbf16>, vector<128x128xbf16>, vector<8x128xf32> -> vector<8x128xf32>
    %48 = vector.extract_strided_slice %8 {offsets = [3, 0], sizes = [1, 128], strides = [1, 1]} : vector<8x128xf32> to vector<1x128xf32>
    %49 = vector.broadcast %48 : vector<1x128xf32> to vector<8x128xf32>
    %50 = arith.addf %47, %49 : vector<8x128xf32>
    %c0_31 = arith.constant 0 : index
    %c0_32 = arith.constant 0 : index
    %c0_33 = arith.constant 0 : index
    %51 = vector.load %arg7[%c0_31, %c0_32, %c0_33] : memref<1x8x128xf32, #tpu.memory_space<vmem>>, vector<1x8x128xf32>
    %52 = vector.shape_cast %51 : vector<1x8x128xf32> to vector<8x128xf32>
    %53 = vector.shape_cast %50 : vector<8x128xf32> to vector<1x8x128xf32>
    tpu.vector_store %arg7[%c0_31, %c0_32, %c0_33], %53 {strides = array<i32>} : memref<1x8x128xf32, #tpu.memory_space<vmem>>, vector<1x8x128xf32>,
    return
  }
  func.func @transform_0(%arg0: i32) -> (i32, i32, i32) {
    %c0_i32 = arith.constant 0 : i32
    %c0_i32_0 = arith.constant 0 : i32
    %c0_i32_1 = arith.constant 0 : i32
    return %arg0, %c0_i32, %c0_i32_0 : i32, i32, i32
  }
  func.func @transform_1(%arg0: i32) -> (i32, i32, i32) {
    %c0_i32 = arith.constant 0 : i32
    %c0_i32_0 = arith.constant 0 : i32
    %c0_i32_1 = arith.constant 0 : i32
    return %arg0, %c0_i32, %c0_i32_0 : i32, i32, i32
  }
  func.func @transform_2(%arg0: i32) -> (i32, i32, i32) {
    %c0_i32 = arith.constant 0 : i32
    %c0_i32_0 = arith.constant 0 : i32
    %c0_i32_1 = arith.constant 0 : i32
    return %arg0, %c0_i32, %c0_i32_0 : i32, i32, i32
  }
  func.func @transform_3(%arg0: i32) -> (i32, i32, i32) {
    %c0_i32 = arith.constant 0 : i32
    %c0_i32_0 = arith.constant 0 : i32
    %c0_i32_1 = arith.constant 0 : i32
    return %arg0, %c0_i32, %c0_i32_0 : i32, i32, i32
  }
  func.func @transform_4(%arg0: i32) -> (i32, i32) {
    %c0_i32 = arith.constant 0 : i32
    %c0_i32_0 = arith.constant 0 : i32
    %c0_i32_1 = arith.constant 0 : i32
    return %c0_i32, %c0_i32_0 : i32, i32
  }
  func.func @transform_5(%arg0: i32) -> (i32, i32) {
    %c0_i32 = arith.constant 0 : i32
    %c0_i32_0 = arith.constant 0 : i32
    %c0_i32_1 = arith.constant 0 : i32
    return %c0_i32, %c0_i32_0 : i32, i32
  }
  func.func @transform_6(%arg0: i32) -> (i32, i32, i32) {
    %c0_i32 = arith.constant 0 : i32
    %c0_i32_0 = arith.constant 0 : i32
    %c0_i32_1 = arith.constant 0 : i32
    return %arg0, %c0_i32, %c0_i32_0 : i32, i32, i32
  }
}

</mosaic_0001>

<llo_original>
// kernel: gnn_forward.1
$region0: #{gnn_forward.1}
  #allocation0 [shape = 'u32[]', space=smem, size = 0x4, offset = 0x4, fixed_abs, tag = 'smem constant byte address 0x4 - core index']
  #allocation1 [shape = 'u32[72,128]{1,0:T(1,128)}', space=vmem, size = 0x9000, scoped, tag = 'internal scratch']
  %s0 = inlined_call_operand.vmem [shape: bf16[1,128,128], index: 0, kind: input, shape index: {}]
  %s1 = inlined_call_operand.vmem [shape: bf16[1,128,128], index: 1, kind: input, shape index: {}]
  %s2 = inlined_call_operand.vmem [shape: bf16[1,8,128], index: 2, kind: input, shape index: {}]
  %s3 = inlined_call_operand.vmem [shape: f32[1,8,128], index: 3, kind: input, shape index: {}]
  %s4 = inlined_call_operand.vmem [shape: bf16[768,128], index: 4, kind: input, shape index: {}]
  %s5 = inlined_call_operand.vmem [shape: f32[8,128], index: 5, kind: input, shape index: {}]
  %s6 = inlined_call_operand.hbm [shape: f32[1,8,128], index: 6, kind: output, shape index: {}]
  %s7 = sld [smem:[#allocation0]]
  $region34: #{gnn_forward.1} parent=0
    _
  %s9 = ssub.s32 1, %s7
  %s10 = scalar_select 0, %s9, %s7
  $region1: #{gnn_forward.1} parent=0
    #allocation2 [shape = 'u8[4096]{0}', space=vmem, size = 0x1000, scoped, tag = 'output window, operand 0, single buffered']
    #allocation3 [shape = 's32[1]{0}', space=sflag, size = 0x4, scoped, tag = 'scoped memory for gnn_forward.1']
    %11 = vsyncpa [#allocation3], 0
    // Predicated region
    $region2: #{gnn_forward.1} parent=1 // pred_check
      _
    $region3: #{gnn_forward.1} parent=1 // pred_check_branch
      %13 = sbr.rel (0) target = $region5
    $region4: #{gnn_forward.1} parent=1 // pred_region
      _
    $region5: #{gnn_forward.1} parent=1 // pred_fallthru
      _
    // Predicated region
    $region6: #{gnn_forward.1} parent=1 // pred_check
      _
    $region7: #{gnn_forward.1} parent=1 // pred_check_branch
      %15 = sbr.rel (0) target = $region9
    $region8: #{gnn_forward.1} parent=1 // pred_region
      _
    $region9: #{gnn_forward.1} parent=1 // pred_fallthru
      _
    // Predicated region
    $region10: #{gnn_forward.1} parent=1 // pred_check
      _
    $region11: #{gnn_forward.1} parent=1 // pred_check_branch
      %17 = sbr.rel (0) target = $region13
    $region12: #{gnn_forward.1} parent=1 // pred_region
      _
    $region13: #{gnn_forward.1} parent=1 // pred_fallthru
      _
    // Predicated region
    $region14: #{gnn_forward.1} parent=1 // pred_check
      _
    $region15: #{gnn_forward.1} parent=1 // pred_check_branch
      %19 = sbr.rel (0) target = $region17
    $region16: #{gnn_forward.1} parent=1 // pred_region
      _
    $region17: #{gnn_forward.1} parent=1 // pred_fallthru
      _
    // Predicated region
    $region18: #{gnn_forward.1} parent=1 // pred_check
      _
    $region19: #{gnn_forward.1} parent=1 // pred_check_branch
      %21 = sbr.rel (0) target = $region21
    $region20: #{gnn_forward.1} parent=1 // pred_region
      _
    $region21: #{gnn_forward.1} parent=1 // pred_fallthru
      _
    // Predicated region
    $region22: #{gnn_forward.1} parent=1 // pred_check
      _
    $region23: #{gnn_forward.1} parent=1 // pred_check_branch
      %23 = sbr.rel (0) target = $region25
    $region24: #{gnn_forward.1} parent=1 // pred_region
      _
    $region25: #{gnn_forward.1} parent=1 // pred_fallthru
      _
    %v24 = vld [vmem:[%s0] sm:$0xf]
    %v25 = vld [vmem:[%s0 + $0x4] sm:$0xf]
    %v26 = vld [vmem:[%s0 + $0x8] sm:$0xf]
    %v27 = vld [vmem:[%s0 + $0xc] sm:$0xf]
    %v28 = vld [vmem:[%s0 + $0x10] sm:$0xf]
    %v29 = vld [vmem:[%s0 + $0x14] sm:$0xf]
    %v30 = vld [vmem:[%s0 + $0x18] sm:$0xf]
    %v31 = vld [vmem:[%s0 + $0x1c] sm:$0xf]
    %v32 = vld [vmem:[%s0 + $0x20] sm:$0xf]
    %v33 = vld [vmem:[%s0 + $0x24] sm:$0xf]
    %v34 = vld [vmem:[%s0 + $0x28] sm:$0xf]
    %v35 = vld [vmem:[%s0 + $0x2c] sm:$0xf]
    %v36 = vld [vmem:[%s0 + $0x30] sm:$0xf]
    %v37 = vld [vmem:[%s0 + $0x34] sm:$0xf]
    %v38 = vld [vmem:[%s0 + $0x38] sm:$0xf]
    %v39 = vld [vmem:[%s0 + $0x3c] sm:$0xf]
    %v40 = vld [vmem:[%s1] sm:$0xf]
    %v41 = vld [vmem:[%s1 + $0x4] sm:$0xf]
    %v42 = vld [vmem:[%s1 + $0x8] sm:$0xf]
    %v43 = vld [vmem:[%s1 + $0xc] sm:$0xf]
    %v44 = vld [vmem:[%s1 + $0x10] sm:$0xf]
    %v45 = vld [vmem:[%s1 + $0x14] sm:$0xf]
    %v46 = vld [vmem:[%s1 + $0x18] sm:$0xf]
    %v47 = vld [vmem:[%s1 + $0x1c] sm:$0xf]
    %v48 = vld [vmem:[%s1 + $0x20] sm:$0xf]
    %v49 = vld [vmem:[%s1 + $0x24] sm:$0xf]
    %v50 = vld [vmem:[%s1 + $0x28] sm:$0xf]
    %v51 = vld [vmem:[%s1 + $0x2c] sm:$0xf]
    %v52 = vld [vmem:[%s1 + $0x30] sm:$0xf]
    %v53 = vld [vmem:[%s1 + $0x34] sm:$0xf]
    %v54 = vld [vmem:[%s1 + $0x38] sm:$0xf]
    %v55 = vld [vmem:[%s1 + $0x3c] sm:$0xf]
    %v56 = vld [vmem:[%s2] sm:$0xf]
    %v57 = vld [vmem:[%s3] sm:$0xff]
    %v58 = vld [vmem:[%s5] sm:$0xff]
    %v75 = vunpack.c.l.b16 %v40
    %v76 = vunpack.c.l.b16 %v41
    %v77 = vunpack.c.l.b16 %v42
    %v78 = vunpack.c.l.b16 %v43
    %v79 = vunpack.c.l.b16 %v44
    %v80 = vunpack.c.l.b16 %v45
    %v81 = vunpack.c.l.b16 %v46
    %v82 = vunpack.c.l.b16 %v47
    %v83 = vunpack.c.l.b16 %v48
    %v84 = vunpack.c.l.b16 %v49
    %v85 = vunpack.c.l.b16 %v50
    %v86 = vunpack.c.l.b16 %v51
    %v87 = vunpack.c.l.b16 %v52
    %v88 = vunpack.c.l.b16 %v53
    %v89 = vunpack.c.l.b16 %v54
    %v90 = vunpack.c.l.b16 %v55
    %v91 = vpack.c.b16 %v76, %v75
    %v92 = vpack.c.b16 %v78, %v77
    %v93 = vpack.c.b16 %v80, %v79
    %v94 = vpack.c.b16 %v82, %v81
    %v95 = vpack.c.b16 %v84, %v83
    %v96 = vpack.c.b16 %v86, %v85
    %v97 = vpack.c.b16 %v88, %v87
    %v98 = vpack.c.b16 %v90, %v89
    %v123 = vunpack.c.l.b16 %v24
    %v124 = vunpack.c.l.b16 %v25
    %v125 = vunpack.c.l.b16 %v26
    %v126 = vunpack.c.l.b16 %v27
    %v127 = vunpack.c.l.b16 %v28
    %v128 = vunpack.c.l.b16 %v29
    %v129 = vunpack.c.l.b16 %v30
    %v130 = vunpack.c.l.b16 %v31
    %v131 = vunpack.c.l.b16 %v32
    %v132 = vunpack.c.l.b16 %v33
    %v133 = vunpack.c.l.b16 %v34
    %v134 = vunpack.c.l.b16 %v35
    %v135 = vunpack.c.l.b16 %v36
    %v136 = vunpack.c.l.b16 %v37
    %v137 = vunpack.c.l.b16 %v38
    %v138 = vunpack.c.l.b16 %v39
    %v139 = vpack.c.b16 %v124, %v123
    %v140 = vpack.c.b16 %v126, %v125
    %v141 = vpack.c.b16 %v128, %v127
    %v142 = vpack.c.b16 %v130, %v129
    %v143 = vpack.c.b16 %v132, %v131
    %v144 = vpack.c.b16 %v134, %v133
    %v145 = vpack.c.b16 %v136, %v135
    %v146 = vpack.c.b16 %v138, %v137
    %155 = vmatpush.bf16.msra.mxu0 %v146
    %156 = vmatpush.bf16.msra.mxu0 %v145
    %157 = vmatpush.bf16.msra.mxu0 %v144
    %158 = vmatpush.bf16.msra.mxu0 %v143
    %159 = vmatpush.bf16.msra.mxu0 %v142
    %160 = vmatpush.bf16.msra.mxu0 %v141
    %161 = vmatpush.bf16.msra.mxu0 %v140
    %162 = vmatpush.bf16.msra.mxu0 %v139
    %163 = vmatmul.bf16.gmra.mxu0 %v91
    %v164 = vpop.f32.mrf.mxu0
    %v165 = vadd.f32 0.0, %v164
    %v166 = vpop.f32.mrf.mxu0
    %v167 = vadd.f32 0.0, %v166
    %168 = vmatmul.bf16.gmra.mxu0 %v92
    %v169 = vpop.f32.mrf.mxu0
    %v170 = vadd.f32 0.0, %v169
    %v171 = vpop.f32.mrf.mxu0
    %v172 = vadd.f32 0.0, %v171
    %173 = vmatmul.bf16.gmra.mxu0 %v93
    %v174 = vpop.f32.mrf.mxu0
    %v175 = vadd.f32 0.0, %v174
    %v176 = vpop.f32.mrf.mxu0
    %v177 = vadd.f32 0.0, %v176
    %178 = vmatmul.bf16.gmra.mxu0 %v94
    %v179 = vpop.f32.mrf.mxu0
    %v180 = vadd.f32 0.0, %v179
    %v181 = vpop.f32.mrf.mxu0
    %v182 = vadd.f32 0.0, %v181
    %183 = vmatmul.bf16.gmra.mxu0 %v95
    %v184 = vpop.f32.mrf.mxu0
    %v185 = vadd.f32 0.0, %v184
    %v186 = vpop.f32.mrf.mxu0
    %v187 = vadd.f32 0.0, %v186
    %188 = vmatmul.bf16.gmra.mxu0 %v96
    %v189 = vpop.f32.mrf.mxu0
    %v190 = vadd.f32 0.0, %v189
    %v191 = vpop.f32.mrf.mxu0
    %v192 = vadd.f32 0.0, %v191
    %193 = vmatmul.bf16.gmra.mxu0 %v97
    %v194 = vpop.f32.mrf.mxu0
    %v195 = vadd.f32 0.0, %v194
    %v196 = vpop.f32.mrf.mxu0
    %v197 = vadd.f32 0.0, %v196
    %198 = vmatmul.bf16.gmra.mxu0 %v98
    %v199 = vpop.f32.mrf.mxu0
    %v200 = vadd.f32 0.0, %v199
    %v201 = vpop.f32.mrf.mxu0
    %v202 = vadd.f32 0.0, %v201
    %203 = vdwg.mxu0
    %v204 = vpack.c.bf16 %v167, %v165
    %v205 = vpack.c.bf16 %v172, %v170
    %v206 = vpack.c.bf16 %v177, %v175
    %v207 = vpack.c.bf16 %v182, %v180
    %v208 = vpack.c.bf16 %v187, %v185
    %v209 = vpack.c.bf16 %v192, %v190
    %v210 = vpack.c.bf16 %v197, %v195
    %v211 = vpack.c.bf16 %v202, %v200
    %v212 = vld [vmem:[%s4] sm:$0xf]
    %v213 = vld [vmem:[%s4 + $0x4] sm:$0xf]
    %v214 = vld [vmem:[%s4 + $0x8] sm:$0xf]
    %v215 = vld [vmem:[%s4 + $0xc] sm:$0xf]
    %v216 = vld [vmem:[%s4 + $0x10] sm:$0xf]
    %v217 = vld [vmem:[%s4 + $0x14] sm:$0xf]
    %v218 = vld [vmem:[%s4 + $0x18] sm:$0xf]
    %v219 = vld [vmem:[%s4 + $0x1c] sm:$0xf]
    %v220 = vld [vmem:[%s4 + $0x20] sm:$0xf]
    %v221 = vld [vmem:[%s4 + $0x24] sm:$0xf]
    %v222 = vld [vmem:[%s4 + $0x28] sm:$0xf]
    %v223 = vld [vmem:[%s4 + $0x2c] sm:$0xf]
    %v224 = vld [vmem:[%s4 + $0x30] sm:$0xf]
    %v225 = vld [vmem:[%s4 + $0x34] sm:$0xf]
    %v226 = vld [vmem:[%s4 + $0x38] sm:$0xf]
    %v227 = vld [vmem:[%s4 + $0x3c] sm:$0xf]
    %v228 = vld [vmem:[%s4 + $0x40] sm:$0xf]
    %v229 = vld [vmem:[%s4 + $0x44] sm:$0xf]
    %v230 = vld [vmem:[%s4 + $0x48] sm:$0xf]
    %v231 = vld [vmem:[%s4 + $0x4c] sm:$0xf]
    %v232 = vld [vmem:[%s4 + $0x50] sm:$0xf]
    %v233 = vld [vmem:[%s4 + $0x54] sm:$0xf]
    %v234 = vld [vmem:[%s4 + $0x58] sm:$0xf]
    %v235 = vld [vmem:[%s4 + $0x5c] sm:$0xf]
    %v236 = vld [vmem:[%s4 + $0x60] sm:$0xf]
    %v237 = vld [vmem:[%s4 + $0x64] sm:$0xf]
    %v238 = vld [vmem:[%s4 + $0x68] sm:$0xf]
    %v239 = vld [vmem:[%s4 + $0x6c] sm:$0xf]
    %v240 = vld [vmem:[%s4 + $0x70] sm:$0xf]
    %v241 = vld [vmem:[%s4 + $0x74] sm:$0xf]
    %v242 = vld [vmem:[%s4 + $0x78] sm:$0xf]
    %v243 = vld [vmem:[%s4 + $0x7c] sm:$0xf]
    %v260 = vunpack.c.l.b16 %v228
    %v261 = vunpack.c.l.b16 %v229
    %v262 = vunpack.c.l.b16 %v230
    %v263 = vunpack.c.l.b16 %v231
    %v264 = vunpack.c.l.b16 %v232
    %v265 = vunpack.c.l.b16 %v233
    %v266 = vunpack.c.l.b16 %v234
    %v267 = vunpack.c.l.b16 %v235
    %v268 = vunpack.c.l.b16 %v236
    %v269 = vunpack.c.l.b16 %v237
    %v270 = vunpack.c.l.b16 %v238
    %v271 = vunpack.c.l.b16 %v239
    %v272 = vunpack.c.l.b16 %v240
    %v273 = vunpack.c.l.b16 %v241
    %v274 = vunpack.c.l.b16 %v242
    %v275 = vunpack.c.l.b16 %v243
    %v276 = vpack.c.b16 %v261, %v260
    %v277 = vpack.c.b16 %v263, %v262
    %v278 = vpack.c.b16 %v265, %v264
    %v279 = vpack.c.b16 %v267, %v266
    %v280 = vpack.c.b16 %v269, %v268
    %v281 = vpack.c.b16 %v271, %v270
    %v282 = vpack.c.b16 %v273, %v272
    %v283 = vpack.c.b16 %v275, %v274
    %292 = vmatpush.bf16.msra.mxu0 %v283
    %293 = vmatpush.bf16.msra.mxu0 %v282
    %294 = vmatpush.bf16.msra.mxu0 %v281
    %295 = vmatpush.bf16.msra.mxu0 %v280
    %296 = vmatpush.bf16.msra.mxu0 %v279
    %297 = vmatpush.bf16.msra.mxu0 %v278
    %298 = vmatpush.bf16.msra.mxu0 %v277
    %299 = vmatpush.bf16.msra.mxu0 %v276
    %300 = vmatmul.bf16.gmra.mxu0 %v204
    %v301 = vpop.f32.mrf.mxu0
    %v302 = vadd.f32 0.0, %v301
    %v303 = vpop.f32.mrf.mxu0
    %v304 = vadd.f32 0.0, %v303
    %305 = vmatmul.bf16.gmra.mxu0 %v205
    %v306 = vpop.f32.mrf.mxu0
    %v307 = vadd.f32 0.0, %v306
    %v308 = vpop.f32.mrf.mxu0
    %v309 = vadd.f32 0.0, %v308
    %310 = vmatmul.bf16.gmra.mxu0 %v206
    %v311 = vpop.f32.mrf.mxu0
    %v312 = vadd.f32 0.0, %v311
    %v313 = vpop.f32.mrf.mxu0
    %v314 = vadd.f32 0.0, %v313
    %315 = vmatmul.bf16.gmra.mxu0 %v207
    %v316 = vpop.f32.mrf.mxu0
    %v317 = vadd.f32 0.0, %v316
    %v318 = vpop.f32.mrf.mxu0
    %v319 = vadd.f32 0.0, %v318
    %320 = vmatmul.bf16.gmra.mxu0 %v208
    %v321 = vpop.f32.mrf.mxu0
    %v322 = vadd.f32 0.0, %v321
    %v323 = vpop.f32.mrf.mxu0
    %v324 = vadd.f32 0.0, %v323
    %325 = vmatmul.bf16.gmra.mxu0 %v209
    %v326 = vpop.f32.mrf.mxu0
    %v327 = vadd.f32 0.0, %v326
    %v328 = vpop.f32.mrf.mxu0
    %v329 = vadd.f32 0.0, %v328
    %330 = vmatmul.bf16.gmra.mxu0 %v210
    %v331 = vpop.f32.mrf.mxu0
    %v332 = vadd.f32 0.0, %v331
    %v333 = vpop.f32.mrf.mxu0
    %v334 = vadd.f32 0.0, %v333
    %335 = vmatmul.bf16.gmra.mxu0 %v211
    %v336 = vpop.f32.mrf.mxu0
    %v337 = vadd.f32 0.0, %v336
    %v338 = vpop.f32.mrf.mxu0
    %v339 = vadd.f32 0.0, %v338
    %340 = vdwg.mxu0
    %v357 = vunpack.c.l.b16 %v212
    %v358 = vunpack.c.l.b16 %v213
    %v359 = vunpack.c.l.b16 %v214
    %v360 = vunpack.c.l.b16 %v215
    %v361 = vunpack.c.l.b16 %v216
    %v362 = vunpack.c.l.b16 %v217
    %v363 = vunpack.c.l.b16 %v218
    %v364 = vunpack.c.l.b16 %v219
    %v365 = vunpack.c.l.b16 %v220
    %v366 = vunpack.c.l.b16 %v221
    %v367 = vunpack.c.l.b16 %v222
    %v368 = vunpack.c.l.b16 %v223
    %v369 = vunpack.c.l.b16 %v224
    %v370 = vunpack.c.l.b16 %v225
    %v371 = vunpack.c.l.b16 %v226
    %v372 = vunpack.c.l.b16 %v227
    %v373 = vpack.c.b16 %v358, %v357
    %v374 = vpack.c.b16 %v360, %v359
    %v375 = vpack.c.b16 %v362, %v361
    %v376 = vpack.c.b16 %v364, %v363
    %v377 = vpack.c.b16 %v366, %v365
    %v378 = vpack.c.b16 %v368, %v367
    %v379 = vpack.c.b16 %v370, %v369
    %v380 = vpack.c.b16 %v372, %v371
    %389 = vmatpush.bf16.msra.mxu0 %v380
    %390 = vmatpush.bf16.msra.mxu0 %v379
    %391 = vmatpush.bf16.msra.mxu0 %v378
    %392 = vmatpush.bf16.msra.mxu0 %v377
    %393 = vmatpush.bf16.msra.mxu0 %v376
    %394 = vmatpush.bf16.msra.mxu0 %v375
    %395 = vmatpush.bf16.msra.mxu0 %v374
    %396 = vmatpush.bf16.msra.mxu0 %v373
    %397 = vmatmul.bf16.gmra.mxu0 %v139
    %v398 = vpop.f32.mrf.mxu0
    %v399 = vadd.f32 %v302, %v398
    %v400 = vpop.f32.mrf.mxu0
    %v401 = vadd.f32 %v304, %v400
    %402 = vmatmul.bf16.gmra.mxu0 %v140
    %v403 = vpop.f32.mrf.mxu0
    %v404 = vadd.f32 %v307, %v403
    %v405 = vpop.f32.mrf.mxu0
    %v406 = vadd.f32 %v309, %v405
    %407 = vmatmul.bf16.gmra.mxu0 %v141
    %v408 = vpop.f32.mrf.mxu0
    %v409 = vadd.f32 %v312, %v408
    %v410 = vpop.f32.mrf.mxu0
    %v411 = vadd.f32 %v314, %v410
    %412 = vmatmul.bf16.gmra.mxu0 %v142
    %v413 = vpop.f32.mrf.mxu0
    %v414 = vadd.f32 %v317, %v413
    %v415 = vpop.f32.mrf.mxu0
    %v416 = vadd.f32 %v319, %v415
    %417 = vmatmul.bf16.gmra.mxu0 %v143
    %v418 = vpop.f32.mrf.mxu0
    %v419 = vadd.f32 %v322, %v418
    %v420 = vpop.f32.mrf.mxu0
    %v421 = vadd.f32 %v324, %v420
    %422 = vmatmul.bf16.gmra.mxu0 %v144
    %v423 = vpop.f32.mrf.mxu0
    %v424 = vadd.f32 %v327, %v423
    %v425 = vpop.f32.mrf.mxu0
    %v426 = vadd.f32 %v329, %v425
    %427 = vmatmul.bf16.gmra.mxu0 %v145
    %v428 = vpop.f32.mrf.mxu0
    %v429 = vadd.f32 %v332, %v428
    %v430 = vpop.f32.mrf.mxu0
    %v431 = vadd.f32 %v334, %v430
    %432 = vmatmul.bf16.gmra.mxu0 %v146
    %v433 = vpop.f32.mrf.mxu0
    %v434 = vadd.f32 %v337, %v433
    %v435 = vpop.f32.mrf.mxu0
    %v436 = vadd.f32 %v339, %v435
    %437 = vdwg.mxu0
    %v438 = vperm.slane %v58, 0
    %v439 = vadd.f32 %v399, %v438
    %v440 = vadd.f32 %v401, %v438
    %v441 = vadd.f32 %v404, %v438
    %v442 = vadd.f32 %v406, %v438
    %v443 = vadd.f32 %v409, %v438
    %v444 = vadd.f32 %v411, %v438
    %v445 = vadd.f32 %v414, %v438
    %v446 = vadd.f32 %v416, %v438
    %v447 = vadd.f32 %v419, %v438
    %v448 = vadd.f32 %v421, %v438
    %v449 = vadd.f32 %v424, %v438
    %v450 = vadd.f32 %v426, %v438
    %v451 = vadd.f32 %v429, %v438
    %v452 = vadd.f32 %v431, %v438
    %v453 = vadd.f32 %v434, %v438
    %v454 = vadd.f32 %v436, %v438
    %v455 = vmax.f32 %v439, 0.0
    %v456 = vmax.f32 %v440, 0.0
    %v457 = vmax.f32 %v441, 0.0
    %v458 = vmax.f32 %v442, 0.0
    %v459 = vmax.f32 %v443, 0.0
    %v460 = vmax.f32 %v444, 0.0
    %v461 = vmax.f32 %v445, 0.0
    %v462 = vmax.f32 %v446, 0.0
    %v463 = vmax.f32 %v447, 0.0
    %v464 = vmax.f32 %v448, 0.0
    %v465 = vmax.f32 %v449, 0.0
    %v466 = vmax.f32 %v450, 0.0
    %v467 = vmax.f32 %v451, 0.0
    %v468 = vmax.f32 %v452, 0.0
    %v469 = vmax.f32 %v453, 0.0
    %v470 = vmax.f32 %v454, 0.0
    %v471 = vpack.c.bf16 %v456, %v455
    %v472 = vpack.c.bf16 %v458, %v457
    %v473 = vpack.c.bf16 %v460, %v459
    %v474 = vpack.c.bf16 %v462, %v461
    %v475 = vpack.c.bf16 %v464, %v463
    %v476 = vpack.c.bf16 %v466, %v465
    %v477 = vpack.c.bf16 %v468, %v467
    %v478 = vpack.c.bf16 %v470, %v469
    %479 = vmatpush.bf16.msra.mxu0 %v478
    %480 = vmatpush.bf16.msra.mxu0 %v477
    %481 = vmatpush.bf16.msra.mxu0 %v476
    %482 = vmatpush.bf16.msra.mxu0 %v475
    %483 = vmatpush.bf16.msra.mxu0 %v474
    %484 = vmatpush.bf16.msra.mxu0 %v473
    %485 = vmatpush.bf16.msra.mxu0 %v472
    %486 = vmatpush.bf16.msra.mxu0 %v471
    %487 = vmatmul.bf16.gmra.mxu0 %v91
    %v488 = vpop.f32.mrf.mxu0
    %v489 = vadd.f32 0.0, %v488
    %v490 = vpop.f32.mrf.mxu0
    %v491 = vadd.f32 0.0, %v490
    %492 = vmatmul.bf16.gmra.mxu0 %v92
    %v493 = vpop.f32.mrf.mxu0
    %v494 = vadd.f32 0.0, %v493
    %v495 = vpop.f32.mrf.mxu0
    %v496 = vadd.f32 0.0, %v495
    %497 = vmatmul.bf16.gmra.mxu0 %v93
    %v498 = vpop.f32.mrf.mxu0
    %v499 = vadd.f32 0.0, %v498
    %v500 = vpop.f32.mrf.mxu0
    %v501 = vadd.f32 0.0, %v500
    %502 = vmatmul.bf16.gmra.mxu0 %v94
    %v503 = vpop.f32.mrf.mxu0
    %v504 = vadd.f32 0.0, %v503
    %v505 = vpop.f32.mrf.mxu0
    %v506 = vadd.f32 0.0, %v505
    %507 = vmatmul.bf16.gmra.mxu0 %v95
    %v508 = vpop.f32.mrf.mxu0
    %v509 = vadd.f32 0.0, %v508
    %v510 = vpop.f32.mrf.mxu0
    %v511 = vadd.f32 0.0, %v510
    %512 = vmatmul.bf16.gmra.mxu0 %v96
    %v513 = vpop.f32.mrf.mxu0
    %v514 = vadd.f32 0.0, %v513
    %v515 = vpop.f32.mrf.mxu0
    %v516 = vadd.f32 0.0, %v515
    %517 = vmatmul.bf16.gmra.mxu0 %v97
    %v518 = vpop.f32.mrf.mxu0
    %v519 = vadd.f32 0.0, %v518
    %v520 = vpop.f32.mrf.mxu0
    %v521 = vadd.f32 0.0, %v520
    %522 = vmatmul.bf16.gmra.mxu0 %v98
    %v523 = vpop.f32.mrf.mxu0
    %v524 = vadd.f32 0.0, %v523
    %v525 = vpop.f32.mrf.mxu0
    %v526 = vadd.f32 0.0, %v525
    %527 = vdwg.mxu0
    %v528 = vpack.c.bf16 %v491, %v489
    %v529 = vpack.c.bf16 %v496, %v494
    %v530 = vpack.c.bf16 %v501, %v499
    %v531 = vpack.c.bf16 %v506, %v504
    %v532 = vpack.c.bf16 %v511, %v509
    %v533 = vpack.c.bf16 %v516, %v514
    %v534 = vpack.c.bf16 %v521, %v519
    %v535 = vpack.c.bf16 %v526, %v524
    %v536 = vld [vmem:[%s4 + $0x80] sm:$0xf]
    %v537 = vld [vmem:[%s4 + $0x84] sm:$0xf]
    %v538 = vld [vmem:[%s4 + $0x88] sm:$0xf]
    %v539 = vld [vmem:[%s4 + $0x8c] sm:$0xf]
    %v540 = vld [vmem:[%s4 + $0x90] sm:$0xf]
    %v541 = vld [vmem:[%s4 + $0x94] sm:$0xf]
    %v542 = vld [vmem:[%s4 + $0x98] sm:$0xf]
    %v543 = vld [vmem:[%s4 + $0x9c] sm:$0xf]
    %v544 = vld [vmem:[%s4 + $0xa0] sm:$0xf]
    %v545 = vld [vmem:[%s4 + $0xa4] sm:$0xf]
    %v546 = vld [vmem:[%s4 + $0xa8] sm:$0xf]
    %v547 = vld [vmem:[%s4 + $0xac] sm:$0xf]
    %v548 = vld [vmem:[%s4 + $0xb0] sm:$0xf]
    %v549 = vld [vmem:[%s4 + $0xb4] sm:$0xf]
    %v550 = vld [vmem:[%s4 + $0xb8] sm:$0xf]
    %v551 = vld [vmem:[%s4 + $0xbc] sm:$0xf]
    %v552 = vld [vmem:[%s4 + $0xc0] sm:$0xf]
    %v553 = vld [vmem:[%s4 + $0xc4] sm:$0xf]
    %v554 = vld [vmem:[%s4 + $0xc8] sm:$0xf]
    %v555 = vld [vmem:[%s4 + $0xcc] sm:$0xf]
    %v556 = vld [vmem:[%s4 + $0xd0] sm:$0xf]
    %v557 = vld [vmem:[%s4 + $0xd4] sm:$0xf]
    %v558 = vld [vmem:[%s4 + $0xd8] sm:$0xf]
    %v559 = vld [vmem:[%s4 + $0xdc] sm:$0xf]
    %v560 = vld [vmem:[%s4 + $0xe0] sm:$0xf]
    %v561 = vld [vmem:[%s4 + $0xe4] sm:$0xf]
    %v562 = vld [vmem:[%s4 + $0xe8] sm:$0xf]
    %v563 = vld [vmem:[%s4 + $0xec] sm:$0xf]
    %v564 = vld [vmem:[%s4 + $0xf0] sm:$0xf]
    %v565 = vld [vmem:[%s4 + $0xf4] sm:$0xf]
    %v566 = vld [vmem:[%s4 + $0xf8] sm:$0xf]
    %v567 = vld [vmem:[%s4 + $0xfc] sm:$0xf]
    %v584 = vunpack.c.l.b16 %v552
    %v585 = vunpack.c.l.b16 %v553
    %v586 = vunpack.c.l.b16 %v554
    %v587 = vunpack.c.l.b16 %v555
    %v588 = vunpack.c.l.b16 %v556
    %v589 = vunpack.c.l.b16 %v557
    %v590 = vunpack.c.l.b16 %v558
    %v591 = vunpack.c.l.b16 %v559
    %v592 = vunpack.c.l.b16 %v560
    %v593 = vunpack.c.l.b16 %v561
    %v594 = vunpack.c.l.b16 %v562
    %v595 = vunpack.c.l.b16 %v563
    %v596 = vunpack.c.l.b16 %v564
    %v597 = vunpack.c.l.b16 %v565
    %v598 = vunpack.c.l.b16 %v566
    %v599 = vunpack.c.l.b16 %v567
    %v600 = vpack.c.b16 %v585, %v584
    %v601 = vpack.c.b16 %v587, %v586
    %v602 = vpack.c.b16 %v589, %v588
    %v603 = vpack.c.b16 %v591, %v590
    %v604 = vpack.c.b16 %v593, %v592
    %v605 = vpack.c.b16 %v595, %v594
    %v606 = vpack.c.b16 %v597, %v596
    %v607 = vpack.c.b16 %v599, %v598
    %616 = vmatpush.bf16.msra.mxu0 %v607
    %617 = vmatpush.bf16.msra.mxu0 %v606
    %618 = vmatpush.bf16.msra.mxu0 %v605
    %619 = vmatpush.bf16.msra.mxu0 %v604
    %620 = vmatpush.bf16.msra.mxu0 %v603
    %621 = vmatpush.bf16.msra.mxu0 %v602
    %622 = vmatpush.bf16.msra.mxu0 %v601
    %623 = vmatpush.bf16.msra.mxu0 %v600
    %624 = vmatmul.bf16.gmra.mxu0 %v528
    %v625 = vpop.f32.mrf.mxu0
    %v626 = vadd.f32 0.0, %v625
    %v627 = vpop.f32.mrf.mxu0
    %v628 = vadd.f32 0.0, %v627
    %629 = vmatmul.bf16.gmra.mxu0 %v529
    %v630 = vpop.f32.mrf.mxu0
    %v631 = vadd.f32 0.0, %v630
    %v632 = vpop.f32.mrf.mxu0
    %v633 = vadd.f32 0.0, %v632
    %634 = vmatmul.bf16.gmra.mxu0 %v530
    %v635 = vpop.f32.mrf.mxu0
    %v636 = vadd.f32 0.0, %v635
    %v637 = vpop.f32.mrf.mxu0
    %v638 = vadd.f32 0.0, %v637
    %639 = vmatmul.bf16.gmra.mxu0 %v531
    %v640 = vpop.f32.mrf.mxu0
    %v641 = vadd.f32 0.0, %v640
    %v642 = vpop.f32.mrf.mxu0
    %v643 = vadd.f32 0.0, %v642
    %644 = vmatmul.bf16.gmra.mxu0 %v532
    %v645 = vpop.f32.mrf.mxu0
    %v646 = vadd.f32 0.0, %v645
    %v647 = vpop.f32.mrf.mxu0
    %v648 = vadd.f32 0.0, %v647
    %649 = vmatmul.bf16.gmra.mxu0 %v533
    %v650 = vpop.f32.mrf.mxu0
    %v651 = vadd.f32 0.0, %v650
    %v652 = vpop.f32.mrf.mxu0
    %v653 = vadd.f32 0.0, %v652
    %654 = vmatmul.bf16.gmra.mxu0 %v534
    %v655 = vpop.f32.mrf.mxu0
    %v656 = vadd.f32 0.0, %v655
    %v657 = vpop.f32.mrf.mxu0
    %v658 = vadd.f32 0.0, %v657
    %659 = vmatmul.bf16.gmra.mxu0 %v535
    %v660 = vpop.f32.mrf.mxu0
    %v661 = vadd.f32 0.0, %v660
    %v662 = vpop.f32.mrf.mxu0
    %v663 = vadd.f32 0.0, %v662
    %664 = vdwg.mxu0
    %v681 = vunpack.c.l.b16 %v536
    %v682 = vunpack.c.l.b16 %v537
    %v683 = vunpack.c.l.b16 %v538
    %v684 = vunpack.c.l.b16 %v539
    %v685 = vunpack.c.l.b16 %v540
    %v686 = vunpack.c.l.b16 %v541
    %v687 = vunpack.c.l.b16 %v542
    %v688 = vunpack.c.l.b16 %v543
    %v689 = vunpack.c.l.b16 %v544
    %v690 = vunpack.c.l.b16 %v545
    %v691 = vunpack.c.l.b16 %v546
    %v692 = vunpack.c.l.b16 %v547
    %v693 = vunpack.c.l.b16 %v548
    %v694 = vunpack.c.l.b16 %v549
    %v695 = vunpack.c.l.b16 %v550
    %v696 = vunpack.c.l.b16 %v551
    %v697 = vpack.c.b16 %v682, %v681
    %v698 = vpack.c.b16 %v684, %v683
    %v699 = vpack.c.b16 %v686, %v685
    %v700 = vpack.c.b16 %v688, %v687
    %v701 = vpack.c.b16 %v690, %v689
    %v702 = vpack.c.b16 %v692, %v691
    %v703 = vpack.c.b16 %v694, %v693
    %v704 = vpack.c.b16 %v696, %v695
    %713 = vmatpush.bf16.msra.mxu0 %v704
    %714 = vmatpush.bf16.msra.mxu0 %v703
    %715 = vmatpush.bf16.msra.mxu0 %v702
    %716 = vmatpush.bf16.msra.mxu0 %v701
    %717 = vmatpush.bf16.msra.mxu0 %v700
    %718 = vmatpush.bf16.msra.mxu0 %v699
    %719 = vmatpush.bf16.msra.mxu0 %v698
    %720 = vmatpush.bf16.msra.mxu0 %v697
    %721 = vmatmul.bf16.gmra.mxu0 %v471
    %v722 = vpop.f32.mrf.mxu0
    %v723 = vadd.f32 %v626, %v722
    %v724 = vpop.f32.mrf.mxu0
    %v725 = vadd.f32 %v628, %v724
    %726 = vmatmul.bf16.gmra.mxu0 %v472
    %v727 = vpop.f32.mrf.mxu0
    %v728 = vadd.f32 %v631, %v727
    %v729 = vpop.f32.mrf.mxu0
    %v730 = vadd.f32 %v633, %v729
    %731 = vmatmul.bf16.gmra.mxu0 %v473
    %v732 = vpop.f32.mrf.mxu0
    %v733 = vadd.f32 %v636, %v732
    %v734 = vpop.f32.mrf.mxu0
    %v735 = vadd.f32 %v638, %v734
    %736 = vmatmul.bf16.gmra.mxu0 %v474
    %v737 = vpop.f32.mrf.mxu0
    %v738 = vadd.f32 %v641, %v737
    %v739 = vpop.f32.mrf.mxu0
    %v740 = vadd.f32 %v643, %v739
    %741 = vmatmul.bf16.gmra.mxu0 %v475
    %v742 = vpop.f32.mrf.mxu0
    %v743 = vadd.f32 %v646, %v742
    %v744 = vpop.f32.mrf.mxu0
    %v745 = vadd.f32 %v648, %v744
    %746 = vmatmul.bf16.gmra.mxu0 %v476
    %v747 = vpop.f32.mrf.mxu0
    %v748 = vadd.f32 %v651, %v747
    %v749 = vpop.f32.mrf.mxu0
    %v750 = vadd.f32 %v653, %v749
    %751 = vmatmul.bf16.gmra.mxu0 %v477
    %v752 = vpop.f32.mrf.mxu0
    %v753 = vadd.f32 %v656, %v752
    %v754 = vpop.f32.mrf.mxu0
    %v755 = vadd.f32 %v658, %v754
    %756 = vmatmul.bf16.gmra.mxu0 %v478
    %v757 = vpop.f32.mrf.mxu0
    %v758 = vadd.f32 %v661, %v757
    %v759 = vpop.f32.mrf.mxu0
    %v760 = vadd.f32 %v663, %v759
    %761 = vdwg.mxu0
    %v762 = vperm.slane %v58, 1
    %v763 = vadd.f32 %v723, %v762
    %v764 = vadd.f32 %v725, %v762
    %v765 = vadd.f32 %v728, %v762
    %v766 = vadd.f32 %v730, %v762
    %v767 = vadd.f32 %v733, %v762
    %v768 = vadd.f32 %v735, %v762
    %v769 = vadd.f32 %v738, %v762
    %v770 = vadd.f32 %v740, %v762
    %v771 = vadd.f32 %v743, %v762
    %v772 = vadd.f32 %v745, %v762
    %v773 = vadd.f32 %v748, %v762
    %v774 = vadd.f32 %v750, %v762
    %v775 = vadd.f32 %v753, %v762
    %v776 = vadd.f32 %v755, %v762
    %v777 = vadd.f32 %v758, %v762
    %v778 = vadd.f32 %v760, %v762
    %v779 = vmax.f32 %v763, 0.0
    %v780 = vmax.f32 %v764, 0.0
    %v781 = vmax.f32 %v765, 0.0
    %v782 = vmax.f32 %v766, 0.0
    %v783 = vmax.f32 %v767, 0.0
    %v784 = vmax.f32 %v768, 0.0
    %v785 = vmax.f32 %v769, 0.0
    %v786 = vmax.f32 %v770, 0.0
    %v787 = vmax.f32 %v771, 0.0
    %v788 = vmax.f32 %v772, 0.0
    %v789 = vmax.f32 %v773, 0.0
    %v790 = vmax.f32 %v774, 0.0
    %v791 = vmax.f32 %v775, 0.0
    %v792 = vmax.f32 %v776, 0.0
    %v793 = vmax.f32 %v777, 0.0
    %v794 = vmax.f32 %v778, 0.0
    %v795 = vpack.c.bf16 %v780, %v779
    %v796 = vpack.c.bf16 %v782, %v781
    %v797 = vpack.c.bf16 %v784, %v783
    %v798 = vpack.c.bf16 %v786, %v785
    %v799 = vpack.c.bf16 %v788, %v787
    %v800 = vpack.c.bf16 %v790, %v789
    %v801 = vpack.c.bf16 %v792, %v791
    %v802 = vpack.c.bf16 %v794, %v793
    %803 = vmatpush.bf16.msra.mxu0 %v802
    %804 = vmatpush.bf16.msra.mxu0 %v801
    %805 = vmatpush.bf16.msra.mxu0 %v800
    %806 = vmatpush.bf16.msra.mxu0 %v799
    %807 = vmatpush.bf16.msra.mxu0 %v798
    %808 = vmatpush.bf16.msra.mxu0 %v797
    %809 = vmatpush.bf16.msra.mxu0 %v796
    %810 = vmatpush.bf16.msra.mxu0 %v795
    %811 = vmatmul.bf16.gmra.mxu0 %v56
    %v812 = vpop.f32.mrf.mxu0
    %v813 = vadd.f32 0.0, %v812
    %v814 = vpop.f32.mrf.mxu0
    %815 = vdwg.mxu0
    %v816 = vmul.f32 %v813, %v57
    %v817 = vpack.c.bf16 %v816, %v816
    %v818 = vld [vmem:[%s4 + $0x100] sm:$0xf]
    %v819 = vld [vmem:[%s4 + $0x104] sm:$0xf]
    %v820 = vld [vmem:[%s4 + $0x108] sm:$0xf]
    %v821 = vld [vmem:[%s4 + $0x10c] sm:$0xf]
    %v822 = vld [vmem:[%s4 + $0x110] sm:$0xf]
    %v823 = vld [vmem:[%s4 + $0x114] sm:$0xf]
    %v824 = vld [vmem:[%s4 + $0x118] sm:$0xf]
    %v825 = vld [vmem:[%s4 + $0x11c] sm:$0xf]
    %v826 = vld [vmem:[%s4 + $0x120] sm:$0xf]
    %v827 = vld [vmem:[%s4 + $0x124] sm:$0xf]
    %v828 = vld [vmem:[%s4 + $0x128] sm:$0xf]
    %v829 = vld [vmem:[%s4 + $0x12c] sm:$0xf]
    %v830 = vld [vmem:[%s4 + $0x130] sm:$0xf]
    %v831 = vld [vmem:[%s4 + $0x134] sm:$0xf]
    %v832 = vld [vmem:[%s4 + $0x138] sm:$0xf]
    %v833 = vld [vmem:[%s4 + $0x13c] sm:$0xf]
    %v834 = vperm.slane %v58, 2
    %v851 = vunpack.c.l.b16 %v818
    %v852 = vunpack.c.l.b16 %v819
    %v853 = vunpack.c.l.b16 %v820
    %v854 = vunpack.c.l.b16 %v821
    %v855 = vunpack.c.l.b16 %v822
    %v856 = vunpack.c.l.b16 %v823
    %v857 = vunpack.c.l.b16 %v824
    %v858 = vunpack.c.l.b16 %v825
    %v859 = vunpack.c.l.b16 %v826
    %v860 = vunpack.c.l.b16 %v827
    %v861 = vunpack.c.l.b16 %v828
    %v862 = vunpack.c.l.b16 %v829
    %v863 = vunpack.c.l.b16 %v830
    %v864 = vunpack.c.l.b16 %v831
    %v865 = vunpack.c.l.b16 %v832
    %v866 = vunpack.c.l.b16 %v833
    %v867 = vpack.c.b16 %v852, %v851
    %v868 = vpack.c.b16 %v854, %v853
    %v869 = vpack.c.b16 %v856, %v855
    %v870 = vpack.c.b16 %v858, %v857
    %v871 = vpack.c.b16 %v860, %v859
    %v872 = vpack.c.b16 %v862, %v861
    %v873 = vpack.c.b16 %v864, %v863
    %v874 = vpack.c.b16 %v866, %v865
    %883 = vmatpush.bf16.msra.mxu0 %v874
    %884 = vmatpush.bf16.msra.mxu0 %v873
    %885 = vmatpush.bf16.msra.mxu0 %v872
    %886 = vmatpush.bf16.msra.mxu0 %v871
    %887 = vmatpush.bf16.msra.mxu0 %v870
    %888 = vmatpush.bf16.msra.mxu0 %v869
    %889 = vmatpush.bf16.msra.mxu0 %v868
    %890 = vmatpush.bf16.msra.mxu0 %v867
    %891 = vmatmul.bf16.gmra.mxu0 %v817
    %v892 = vpop.f32.mrf.mxu0
    %v893 = vadd.f32 %v834, %v892
    %v894 = vpop.f32.mrf.mxu0
    %895 = vdwg.mxu0
    %v896 = vmax.f32 %v893, 0.0
    %v897 = vpack.c.bf16 %v896, %v896
    %v898 = vld [vmem:[%s4 + $0x140] sm:$0xf]
    %v899 = vld [vmem:[%s4 + $0x144] sm:$0xf]
    %v900 = vld [vmem:[%s4 + $0x148] sm:$0xf]
    %v901 = vld [vmem:[%s4 + $0x14c] sm:$0xf]
    %v902 = vld [vmem:[%s4 + $0x150] sm:$0xf]
    %v903 = vld [vmem:[%s4 + $0x154] sm:$0xf]
    %v904 = vld [vmem:[%s4 + $0x158] sm:$0xf]
    %v905 = vld [vmem:[%s4 + $0x15c] sm:$0xf]
    %v906 = vld [vmem:[%s4 + $0x160] sm:$0xf]
    %v907 = vld [vmem:[%s4 + $0x164] sm:$0xf]
    %v908 = vld [vmem:[%s4 + $0x168] sm:$0xf]
    %v909 = vld [vmem:[%s4 + $0x16c] sm:$0xf]
    %v910 = vld [vmem:[%s4 + $0x170] sm:$0xf]
    %v911 = vld [vmem:[%s4 + $0x174] sm:$0xf]
    %v912 = vld [vmem:[%s4 + $0x178] sm:$0xf]
    %v913 = vld [vmem:[%s4 + $0x17c] sm:$0xf]
    %v914 = vperm.slane %v58, 3
    %v931 = vunpack.c.l.b16 %v898
    %v932 = vunpack.c.l.b16 %v899
    %v933 = vunpack.c.l.b16 %v900
    %v934 = vunpack.c.l.b16 %v901
    %v935 = vunpack.c.l.b16 %v902
    %v936 = vunpack.c.l.b16 %v903
    %v937 = vunpack.c.l.b16 %v904
    %v938 = vunpack.c.l.b16 %v905
    %v939 = vunpack.c.l.b16 %v906
    %v940 = vunpack.c.l.b16 %v907
    %v941 = vunpack.c.l.b16 %v908
    %v942 = vunpack.c.l.b16 %v909
    %v943 = vunpack.c.l.b16 %v910
    %v944 = vunpack.c.l.b16 %v911
    %v945 = vunpack.c.l.b16 %v912
    %v946 = vunpack.c.l.b16 %v913
    %v947 = vpack.c.b16 %v932, %v931
    %v948 = vpack.c.b16 %v934, %v933
    %v949 = vpack.c.b16 %v936, %v935
    %v950 = vpack.c.b16 %v938, %v937
    %v951 = vpack.c.b16 %v940, %v939
    %v952 = vpack.c.b16 %v942, %v941
    %v953 = vpack.c.b16 %v944, %v943
    %v954 = vpack.c.b16 %v946, %v945
    %963 = vmatpush.bf16.msra.mxu0 %v954
    %964 = vmatpush.bf16.msra.mxu0 %v953
    %965 = vmatpush.bf16.msra.mxu0 %v952
    %966 = vmatpush.bf16.msra.mxu0 %v951
    %967 = vmatpush.bf16.msra.mxu0 %v950
    %968 = vmatpush.bf16.msra.mxu0 %v949
    %969 = vmatpush.bf16.msra.mxu0 %v948
    %970 = vmatpush.bf16.msra.mxu0 %v947
    %971 = vmatmul.bf16.gmra.mxu0 %v897
    %v972 = vpop.f32.mrf.mxu0
    %v973 = vadd.f32 %v914, %v972
    %v974 = vpop.f32.mrf.mxu0
    %975 = vdwg.mxu0
    %976 = vst [vmem:[#allocation2] sm:$0xff] %v973
    // Predicated region
    $region26: #{gnn_forward.1} parent=1 // pred_check
      _
    $region27: #{gnn_forward.1} parent=1 // pred_check_branch
      %978 = sbr.rel (0) target = $region29
    $region28: #{gnn_forward.1} parent=1 // pred_region
      %980 = vsyncadd [#allocation3], 0
      %s982 = sshll.u32 [#allocation2], 4
      %s983 = int_to_ptr.vmem [resolvable:$true] %s982
      %s984 = sshll.u32 %s6, 4
      %s985 = int_to_ptr.hbm [resolvable:$true] %s984
      %987 = dma.vmem_to_hbm [thread:$0]  %s983, 128, %s985, [#allocation3]
    $region29: #{gnn_forward.1} parent=1 // pred_fallthru
      _
    // Predicated region
    $region30: #{gnn_forward.1} parent=1 // pred_check
      _
    $region31: #{gnn_forward.1} parent=1 // pred_check_branch
      %989 = sbr.rel (0) target = $region33
    $region32: #{gnn_forward.1} parent=1 // pred_region
      %991 = dma.done [#allocation3], 128
    $region33: #{gnn_forward.1} parent=1 // pred_fallthru
      _
    %992 = vsyncpa [#allocation3], 1

</llo_original>
